<compile_context>
chip_gen: v7x
topology: tpu7x:2x2x1
jax: 0.10.0
libtpu: 0.0.40
codegen_flags: <defaults>
</compile_context>

<pallas_src>
import jax
import jax.numpy as jnp
from jax import lax
from jax.experimental import pallas as pl
from jax.experimental.pallas import tpu as pltpu

BATCH = 2
C, H, W = 4, 16, 16
IN_FEATURES = C * H * W          # 1024
HIDDEN = 32
NUM_CLASSES = 10
OUT_PAD = 128                    # lane-dense padded output width
MAX_TM = 1024                    # max batch-tile rows (VMEM ~9 MiB double-buffered)


def base_head_kernel(x_ref, w1_ref, bias_ref, w2_ref, o_ref):
    # f32 -> bf16 cast in-kernel (VPU work, hidden under the matmul). Reading x as
    # f32 straight from HBM avoids a separate XLA convert pass over the batch.
    x = x_ref[...].astype(jnp.bfloat16)                        # (tm, IN_FEATURES)
    # base: Linear (x @ w1^T). w1 stays lane-dense (HIDDEN, IN_FEATURES); the
    # contraction on rhs dim 1 lowers to tpu.matmul with a transposed weight load
    # on the MXU (no per-step XLU transpose observed in the MLIR dump).
    h = lax.dot_general(
        x, w1_ref[...],
        dimension_numbers=(((1,), (1,)), ((), ())),
        preferred_element_type=jnp.float32,
    )                                                          # (tm, HIDDEN) f32
    h = h + bias_ref[0:1, :HIDDEN]                             # f32 epilogue (VPU)
    h = jnp.maximum(h, 0.0)                                    # ReLU
    # head: Linear into a 128-lane padded slab (cols >= NUM_CLASSES stay zero).
    o = jnp.dot(h.astype(jnp.bfloat16), w2_ref[...],
                preferred_element_type=jnp.float32)            # (tm, OUT_PAD) f32
    # bf16 store halves output HBM traffic; wrapper casts back to f32 after slicing.
    o_ref[...] = (o + bias_ref[1:2, :]).astype(jnp.bfloat16)


def _run_block(x_flat_f32, w1_bf16, bias_packed, w2_pad_bf16, tm):
    """Run the fused base+head kernel over a row count that is a multiple of tm."""
    n = x_flat_f32.shape[0]
    return pl.pallas_call(
        base_head_kernel,
        out_shape=jax.ShapeDtypeStruct((n, OUT_PAD), jnp.bfloat16),
        grid=(n // tm,),
        in_specs=[
            pl.BlockSpec((tm, IN_FEATURES), lambda i: (i, 0)),       # x tile (f32)
            pl.BlockSpec((HIDDEN, IN_FEATURES), lambda i: (0, 0)),   # w1 resident
            pl.BlockSpec((2, OUT_PAD), lambda i: (0, 0)),            # packed biases
            pl.BlockSpec((HIDDEN, OUT_PAD), lambda i: (0, 0)),       # w2 resident
        ],
        out_specs=pl.BlockSpec((tm, OUT_PAD), lambda i: (i, 0)),
        compiler_params=pltpu.CompilerParams(
            dimension_semantics=("parallel",),      # v7x: shard batch over 2 TCs
            vmem_limit_bytes=32 * 1024 * 1024,      # headroom for tm=1024 f32 tiles
        ),
    )(x_flat_f32, w1_bf16, bias_packed, w2_pad_bf16)


def _choose_tm(n):
    """Batch tile height.

    Mem-bound kernel -> prefer big tiles (up to 1024 rows) to amortize the ~0.35us
    per-grid-step overhead, but cap at n//2 so there are >= 2 grid steps and both
    of v7x's TensorCores engage.  Multiples of 256 fill the v6e/v7x MXU pass;
    multiples of 16 keep bf16 sublane packing dense on smaller batches.
    """
    half = n // 2
    if half >= 256:
        return min(MAX_TM, (half // 256) * 256)
    if half >= 16:
        return (half // 16) * 16
    return 16 * pl.cdiv(n, 16)   # tiny batch: single padded grid point


def base_head_split(x_nchw, w1_bf16, bias_packed, w2_pad_bf16):
    """x_nchw: (N, C, H, W) float32 -> (N, NUM_CLASSES) float32."""
    n = x_nchw.shape[0]
    # Reshape only -- no dtype cast here (cast happens in-kernel).
    x_flat = x_nchw.reshape(n, -1)

    tm = _choose_tm(n)
    n_main = (n // tm) * tm
    outs = []
    if n_main > 0:
        outs.append(_run_block(x_flat[:n_main], w1_bf16, bias_packed,
                               w2_pad_bf16, tm))
    rem = n - n_main
    if rem > 0:
        # Only the small remainder is padded/copied -- never the whole batch.
        tm_r = 16 * pl.cdiv(rem, 16)
        x_rem = x_flat[n_main:]
        if tm_r != rem:
            x_rem = jnp.pad(x_rem, ((0, tm_r - rem), (0, 0)))
        outs.append(_run_block(x_rem, w1_bf16, bias_packed, w2_pad_bf16,
                               tm_r)[:rem])
    out_pad = outs[0] if len(outs) == 1 else jnp.concatenate(outs, axis=0)
    # Slice away lane padding; cast back to f32 to match the torch module's output.
    return out_pad[:n, :NUM_CLASSES].astype(jnp.float32)


def _linear_init(key, fan_in, fan_out):
    # torch.nn.Linear default init: U(-1/sqrt(fan_in), 1/sqrt(fan_in)),
    # weight stored (out_features, in_features) like torch.
    kw, kb = jax.random.split(key)
    bound = 1.0 / jnp.sqrt(jnp.float32(fan_in))
    w = jax.random.uniform(kw, (fan_out, fan_in), jnp.float32, -bound, bound)
    b = jax.random.uniform(kb, (fan_out,), jnp.float32, -bound, bound)
    return w, b


if __name__ == "__main__":
    key = jax.random.PRNGKey(0)
    kx, k1, k2 = jax.random.split(key, 3)

    x = jax.random.normal(kx, (BATCH, C, H, W), jnp.float32)
    w1_t, b1 = _linear_init(k1, IN_FEATURES, HIDDEN)     # (HIDDEN, IN_FEATURES)
    w2_t, b2 = _linear_init(k2, HIDDEN, NUM_CLASSES)     # (NUM_CLASSES, HIDDEN)

    # One-time repacking into kernel-friendly layouts (outside the hot path).
    w1_bf16 = w1_t.astype(jnp.bfloat16)                              # (32, 1024)
    w2_pad = jnp.zeros((HIDDEN, OUT_PAD), jnp.bfloat16)
    w2_pad = w2_pad.at[:, :NUM_CLASSES].set(w2_t.T.astype(jnp.bfloat16))
    bias_packed = jnp.zeros((2, OUT_PAD), jnp.float32)
    bias_packed = bias_packed.at[0, :HIDDEN].set(b1)
    bias_packed = bias_packed.at[1, :NUM_CLASSES].set(b2)

    fwd = jax.jit(base_head_split)
    out = jax.block_until_ready(fwd(x, w1_bf16, bias_packed, w2_pad))
    assert out.shape == (BATCH, NUM_CLASSES)

    # Reference 1: same math with matching bf16 operand casts (tight-ish check;
    # kernel output is additionally rounded to bf16 at the store).
    x_flat = x.reshape(BATCH, -1)
    xb = x_flat.astype(jnp.bfloat16)
    h_ref = jnp.maximum(
        lax.dot_general(xb, w1_bf16, (((1,), (1,)), ((), ())),
                        preferred_element_type=jnp.float32) + b1, 0.0)
    ref_bf16 = jnp.dot(h_ref.astype(jnp.bfloat16), w2_t.T.astype(jnp.bfloat16),
                       preferred_element_type=jnp.float32) + b2
    assert jnp.allclose(out, ref_bf16, atol=1e-2, rtol=1e-2), \
        float(jnp.max(jnp.abs(out - ref_bf16)))

    # Reference 2: full-f32 PyTorch-equivalent forward (loose, bf16 rounding only).
    ref_f32 = jnp.maximum(x_flat @ w1_t.T + b1, 0.0) @ w2_t.T + b2
    assert jnp.allclose(out, ref_f32, atol=6e-2, rtol=6e-2), \
        float(jnp.max(jnp.abs(out - ref_f32)))

    print("KERNEL_OK")
</pallas_src>

<mosaic_0001>
module attributes {stable_mosaic.version = 11 : i64} {
  func.func @base_head_kernel(%arg0: i32, %arg1: memref<16x1024xf32, #tpu.memory_space<vmem>>, %arg2: memref<32x1024xbf16, #tpu.memory_space<vmem>>, %arg3: memref<2x128xf32, #tpu.memory_space<vmem>>, %arg4: memref<32x128xbf16, #tpu.memory_space<vmem>>, %arg5: memref<16x128xbf16, #tpu.memory_space<vmem>>) attributes {dimension_semantics = [#tpu.dimension_semantics<parallel>], iteration_bounds = array<i64: 1>, scalar_prefetch = 0 : i64, scratch_operands = 0 : i64, tpu.core_type = #tpu.core_type<tc>, window_params = [{transform_indices = @transform_0, window_bounds = array<i64: 16, 1024>}, {pipeline_mode = #tpu.pipeline_mode<synchronous>, transform_indices = @transform_1, window_bounds = array<i64: 32, 1024>}, {pipeline_mode = #tpu.pipeline_mode<synchronous>, transform_indices = @transform_2, window_bounds = array<i64: 2, 128>}, {pipeline_mode = #tpu.pipeline_mode<synchronous>, transform_indices = @transform_3, window_bounds = array<i64: 32, 128>}, {transform_indices = @transform_4, window_bounds = array<i64: 16, 128>}]} {
    %c0 = arith.constant 0 : index
    %c0_0 = arith.constant 0 : index
    %0 = vector.load %arg1[%c0, %c0_0] : memref<16x1024xf32, #tpu.memory_space<vmem>>, vector<16x1024xf32>
    %1 = arith.truncf %0 : vector<16x1024xf32> to vector<16x1024xbf16>
    %c0_1 = arith.constant 0 : index
    %c0_2 = arith.constant 0 : index
    %2 = vector.load %arg2[%c0_1, %c0_2] : memref<32x1024xbf16, #tpu.memory_space<vmem>>, vector<32x1024xbf16>
    %cst = arith.constant dense<0.000000e+00> : vector<16x32xf32>
    %3 = tpu.matmul %1, %2, %cst {dimension_numbers = #tpu.dot_dimension_numbers<[1], [1], [0], [0], [0, 0, 1, 0], [], []>} : vector<16x1024xbf16>, vector<32x1024xbf16>, vector<16x32xf32> -> vector<16x32xf32>
    %c0_3 = arith.constant 0 : index
    %c0_4 = arith.constant 0 : index
    %4 = vector.load %arg3[%c0_3, %c0_4] : memref<2x128xf32, #tpu.memory_space<vmem>>, vector<1x32xf32>
    %5 = vector.broadcast %4 : vector<1x32xf32> to vector<16x32xf32>
    %6 = arith.addf %3, %5 : vector<16x32xf32>
    %cst_5 = arith.constant 0.000000e+00 : f32
    %7 = vector.broadcast %cst_5 : f32 to vector<16x32xf32>
    %8 = arith.maximumf %6, %7 : vector<16x32xf32>
    %9 = arith.truncf %8 : vector<16x32xf32> to vector<16x32xbf16>
    %c0_6 = arith.constant 0 : index
    %c0_7 = arith.constant 0 : index
    %10 = vector.load %arg4[%c0_6, %c0_7] : memref<32x128xbf16, #tpu.memory_space<vmem>>, vector<32x128xbf16>
    %cst_8 = arith.constant dense<0.000000e+00> : vector<16x128xf32>
    %11 = tpu.matmul %9, %10, %cst_8 {dimension_numbers = #tpu.dot_dimension_numbers<[1], [0], [0], [1], [0, 0, 1, 1], [], []>} : vector<16x32xbf16>, vector<32x128xbf16>, vector<16x128xf32> -> vector<16x128xf32>
    %c1 = arith.constant 1 : index
    %c0_9 = arith.constant 0 : index
    %12 = vector.load %arg3[%c1, %c0_9] : memref<2x128xf32, #tpu.memory_space<vmem>>, vector<1x128xf32>
    %13 = vector.broadcast %12 : vector<1x128xf32> to vector<16x128xf32>
    %14 = arith.addf %11, %13 : vector<16x128xf32>
    %15 = arith.truncf %14 : vector<16x128xf32> to vector<16x128xbf16>
    %c0_10 = arith.constant 0 : index
    %c0_11 = arith.constant 0 : index
    %16 = vector.load %arg5[%c0_10, %c0_11] : memref<16x128xbf16, #tpu.memory_space<vmem>>, vector<16x128xbf16>
    tpu.vector_store %arg5[%c0_10, %c0_11], %15 {strides = array<i32>} : memref<16x128xbf16, #tpu.memory_space<vmem>>, vector<16x128xbf16>,
    return
  }
  func.func @transform_0(%arg0: i32) -> (i32, i32) {
    %c0_i32 = arith.constant 0 : i32
    %c0_i32_0 = arith.constant 0 : i32
    return %arg0, %c0_i32 : i32, i32
  }
  func.func @transform_1(%arg0: i32) -> (i32, i32) {
    %c0_i32 = arith.constant 0 : i32
    %c0_i32_0 = arith.constant 0 : i32
    %c0_i32_1 = arith.constant 0 : i32
    return %c0_i32, %c0_i32_0 : i32, i32
  }
  func.func @transform_2(%arg0: i32) -> (i32, i32) {
    %c0_i32 = arith.constant 0 : i32
    %c0_i32_0 = arith.constant 0 : i32
    %c0_i32_1 = arith.constant 0 : i32
    return %c0_i32, %c0_i32_0 : i32, i32
  }
  func.func @transform_3(%arg0: i32) -> (i32, i32) {
    %c0_i32 = arith.constant 0 : i32
    %c0_i32_0 = arith.constant 0 : i32
    %c0_i32_1 = arith.constant 0 : i32
    return %c0_i32, %c0_i32_0 : i32, i32
  }
  func.func @transform_4(%arg0: i32) -> (i32, i32) {
    %c0_i32 = arith.constant 0 : i32
    %c0_i32_0 = arith.constant 0 : i32
    return %arg0, %c0_i32 : i32, i32
  }
}

</mosaic_0001>

<llo_original>
// kernel: base_head_split.1
$region0: #{base_head_split.1}
  #allocation0 [shape = 'u32[]', space=smem, size = 0x4, offset = 0x4, fixed_abs, tag = 'smem constant byte address 0x4 - core index']
  #allocation1 [shape = 'u32[144,128]{1,0:T(1,128)}', space=vmem, size = 0x12000, scoped, tag = 'internal scratch']
  %s0 = inlined_call_operand.vmem [shape: f32[16,1024], index: 0, kind: input, shape index: {}]
  %s1 = inlined_call_operand.vmem [shape: bf16[32,1024], index: 1, kind: input, shape index: {}]
  %s2 = inlined_call_operand.vmem [shape: f32[2,128], index: 2, kind: input, shape index: {}]
  %s3 = inlined_call_operand.vmem [shape: bf16[32,128], index: 3, kind: input, shape index: {}]
  %s4 = inlined_call_operand.vmem [shape: bf16[16,128], index: 4, kind: output, shape index: {}]
  %s5 = sld [smem:[#allocation0]]
  $region26: #{base_head_split.1} parent=0
    _
  %s7 = ssub.s32 1, %s5
  %s8 = scalar_select 0, %s7, %s5
  // Predicated region
  $region2: #{base_head_split.1} parent=0 // pred_check
    _
  $region3: #{base_head_split.1} parent=0 // pred_check_branch
    %10 = sbr.rel (0) target = $region5
  $region4: #{base_head_split.1} parent=0 // pred_region
    _
  $region5: #{base_head_split.1} parent=0 // pred_fallthru
    _
  // Predicated region
  $region6: #{base_head_split.1} parent=0 // pred_check
    _
  $region7: #{base_head_split.1} parent=0 // pred_check_branch
    %12 = sbr.rel (0) target = $region9
  $region8: #{base_head_split.1} parent=0 // pred_region
    _
  $region9: #{base_head_split.1} parent=0 // pred_fallthru
    _
  // Predicated region
  $region10: #{base_head_split.1} parent=0 // pred_check
    _
  $region11: #{base_head_split.1} parent=0 // pred_check_branch
    %14 = sbr.rel (0) target = $region13
  $region12: #{base_head_split.1} parent=0 // pred_region
    _
  $region13: #{base_head_split.1} parent=0 // pred_fallthru
    _
  // Predicated region
  $region14: #{base_head_split.1} parent=0 // pred_check
    _
  $region15: #{base_head_split.1} parent=0 // pred_check_branch
    %16 = sbr.rel (0) target = $region17
  $region16: #{base_head_split.1} parent=0 // pred_region
    _
  $region17: #{base_head_split.1} parent=0 // pred_fallthru
    _
  %v18 = vld [vmem:[%s0] sm:$0xff]
  %v19 = vld [vmem:[%s0 + $0x8] sm:$0xff]
  %v20 = vld [vmem:[%s0 + $0x10] sm:$0xff]
  %v21 = vld [vmem:[%s0 + $0x18] sm:$0xff]
  %v22 = vld [vmem:[%s0 + $0x20] sm:$0xff]
  %v23 = vld [vmem:[%s0 + $0x28] sm:$0xff]
  %v24 = vld [vmem:[%s0 + $0x30] sm:$0xff]
  %v25 = vld [vmem:[%s0 + $0x38] sm:$0xff]
  %v26 = vld [vmem:[%s0 + $0x40] sm:$0xff]
  %v27 = vld [vmem:[%s0 + $0x48] sm:$0xff]
  %v28 = vld [vmem:[%s0 + $0x50] sm:$0xff]
  %v29 = vld [vmem:[%s0 + $0x58] sm:$0xff]
  %v30 = vld [vmem:[%s0 + $0x60] sm:$0xff]
  %v31 = vld [vmem:[%s0 + $0x68] sm:$0xff]
  %v32 = vld [vmem:[%s0 + $0x70] sm:$0xff]
  %v33 = vld [vmem:[%s0 + $0x78] sm:$0xff]
  %v34 = vpack.c.bf16 %v26, %v18
  %v35 = vpack.c.bf16 %v27, %v19
  %v36 = vpack.c.bf16 %v28, %v20
  %v37 = vpack.c.bf16 %v29, %v21
  %v38 = vpack.c.bf16 %v30, %v22
  %v39 = vpack.c.bf16 %v31, %v23
  %v40 = vpack.c.bf16 %v32, %v24
  %v41 = vpack.c.bf16 %v33, %v25
  %v42 = vld [vmem:[%s1] sm:$0xff]
  %v43 = vld [vmem:[%s1 + $0x8] sm:$0xff]
  %v44 = vld [vmem:[%s1 + $0x10] sm:$0xff]
  %v45 = vld [vmem:[%s1 + $0x18] sm:$0xff]
  %v46 = vld [vmem:[%s1 + $0x20] sm:$0xff]
  %v47 = vld [vmem:[%s1 + $0x28] sm:$0xff]
  %v48 = vld [vmem:[%s1 + $0x30] sm:$0xff]
  %v49 = vld [vmem:[%s1 + $0x38] sm:$0xff]
  %v50 = vld [vmem:[%s1 + $0x40] sm:$0xff]
  %v51 = vld [vmem:[%s1 + $0x48] sm:$0xff]
  %v52 = vld [vmem:[%s1 + $0x50] sm:$0xff]
  %v53 = vld [vmem:[%s1 + $0x58] sm:$0xff]
  %v54 = vld [vmem:[%s1 + $0x60] sm:$0xff]
  %v55 = vld [vmem:[%s1 + $0x68] sm:$0xff]
  %v56 = vld [vmem:[%s1 + $0x70] sm:$0xff]
  %v57 = vld [vmem:[%s1 + $0x78] sm:$0xff]
  %v58 = vld [vmem:[%s2] sm:$0x1]
  %v59 = vlaneseq
  %v60 = vshrl.u32 %v59, 7
  %v61 = vsub.s32 0, %v60
  %v62 = vrot.slane %v58, %v61
  %v79 = vunpack.c.l.b16 %v42
  %v80 = vunpack.c.h.b16 %v42
  %v81 = vunpack.c.l.b16 %v43
  %v82 = vunpack.c.h.b16 %v43
  %v83 = vunpack.c.l.b16 %v44
  %v84 = vunpack.c.h.b16 %v44
  %v85 = vunpack.c.l.b16 %v45
  %v86 = vunpack.c.h.b16 %v45
  %v87 = vunpack.c.l.b16 %v46
  %v88 = vunpack.c.h.b16 %v46
  %v89 = vunpack.c.l.b16 %v47
  %v90 = vunpack.c.h.b16 %v47
  %v91 = vunpack.c.l.b16 %v48
  %v92 = vunpack.c.h.b16 %v48
  %v93 = vunpack.c.l.b16 %v49
  %v94 = vunpack.c.h.b16 %v49
  %v95 = vunpack.c.l.b16 %v50
  %v96 = vunpack.c.h.b16 %v50
  %v97 = vunpack.c.l.b16 %v51
  %v98 = vunpack.c.h.b16 %v51
  %v99 = vunpack.c.l.b16 %v52
  %v100 = vunpack.c.h.b16 %v52
  %v101 = vunpack.c.l.b16 %v53
  %v102 = vunpack.c.h.b16 %v53
  %v103 = vunpack.c.l.b16 %v54
  %v104 = vunpack.c.h.b16 %v54
  %v105 = vunpack.c.l.b16 %v55
  %v106 = vunpack.c.h.b16 %v55
  %v107 = vunpack.c.l.b16 %v56
  %v108 = vunpack.c.h.b16 %v56
  %v109 = vunpack.c.l.b16 %v57
  %v110 = vunpack.c.h.b16 %v57
  %v111 = vpack.c.b16 %v87, %v79
  %v112 = vpack.c.b16 %v88, %v80
  %v113 = vpack.c.b16 %v89, %v81
  %v114 = vpack.c.b16 %v90, %v82
  %v115 = vpack.c.b16 %v91, %v83
  %v116 = vpack.c.b16 %v92, %v84
  %v117 = vpack.c.b16 %v93, %v85
  %v118 = vpack.c.b16 %v94, %v86
  %v119 = vpack.c.b16 %v103, %v95
  %v120 = vpack.c.b16 %v104, %v96
  %v121 = vpack.c.b16 %v105, %v97
  %v122 = vpack.c.b16 %v106, %v98
  %v123 = vpack.c.b16 %v107, %v99
  %v124 = vpack.c.b16 %v108, %v100
  %v125 = vpack.c.b16 %v109, %v101
  %v126 = vpack.c.b16 %v110, %v102
  %143 = vmatprep.subr.bf16.mxu0 %v112
  %144 = vmatpush1.bf16.xpose.msra.mxu0 %v111
  %145 = vmatprep.subr.bf16.mxu0 %v120
  %146 = vmatpush1.bf16.xpose.msra.mxu0 %v119
  %147 = vmatprep.subr.bf16.mxu0 0
  %148 = vmatpush1.bf16.xpose.msra.mxu0 0
  %149 = vmatprep.subr.bf16.mxu0 0
  %150 = vmatpush1.bf16.xpose.msra.mxu0 0
  %151 = vmatprep.subr.bf16.mxu0 0
  %152 = vmatpush1.bf16.xpose.msra.mxu0 0
  %153 = vmatprep.subr.bf16.mxu0 0
  %154 = vmatpush1.bf16.xpose.msra.mxu0 0
  %155 = vmatprep.subr.bf16.mxu0 0
  %156 = vmatpush1.bf16.xpose.msra.mxu0 0
  %157 = vmatprep.subr.bf16.mxu0 0
  %158 = vmatpush1.bf16.xpose.msra.mxu0 0
  %159 = vmatprep.subr.bf16.mxu0 0
  %160 = vmatpush1.bf16.xpose.msra.mxu0 0
  %161 = vmatprep.subr.bf16.mxu0 0
  %162 = vmatpush1.bf16.xpose.msra.mxu0 0
  %163 = vmatprep.subr.bf16.mxu0 0
  %164 = vmatpush1.bf16.xpose.msra.mxu0 0
  %165 = vmatprep.subr.bf16.mxu0 0
  %166 = vmatpush1.bf16.xpose.msra.mxu0 0
  %167 = vmatprep.subr.bf16.mxu0 0
  %168 = vmatpush1.bf16.xpose.msra.mxu0 0
  %169 = vmatprep.subr.bf16.mxu0 0
  %170 = vmatpush1.bf16.xpose.msra.mxu0 0
  %171 = vmatprep.subr.bf16.mxu0 0
  %172 = vmatpush1.bf16.xpose.msra.mxu0 0
  %173 = vmatprep.subr.bf16.mxu0 0
  %174 = vmatpush1.bf16.xpose.msra.mxu0 0
  %175 = vmatprep.mubr.bf16.mxu0 %v35
  %176 = vmatmul.mubr.bf16.gmra.mrb[0].mxu0 %v34
  %v177 = vpop.f32.mrb[0].mxu0
  %v178 = vadd.f32 %v62, %v177
  %v179 = vpop.f32.mrb[0].mxu0
  %v180 = vpop.f32.mrb[0].mxu0
  %v181 = vadd.f32 %v62, %v180
  %v182 = vpop.f32.mrb[0].mxu0
  %183 = vdwg.mxu0
  %184 = vmatprep.subr.bf16.mxu0 %v114
  %185 = vmatpush1.bf16.xpose.msra.mxu0 %v113
  %186 = vmatprep.subr.bf16.mxu0 %v122
  %187 = vmatpush1.bf16.xpose.msra.mxu0 %v121
  %188 = vmatprep.subr.bf16.mxu0 0
  %189 = vmatpush1.bf16.xpose.msra.mxu0 0
  %190 = vmatprep.subr.bf16.mxu0 0
  %191 = vmatpush1.bf16.xpose.msra.mxu0 0
  %192 = vmatprep.subr.bf16.mxu0 0
  %193 = vmatpush1.bf16.xpose.msra.mxu0 0
  %194 = vmatprep.subr.bf16.mxu0 0
  %195 = vmatpush1.bf16.xpose.msra.mxu0 0
  %196 = vmatprep.subr.bf16.mxu0 0
  %197 = vmatpush1.bf16.xpose.msra.mxu0 0
  %198 = vmatprep.subr.bf16.mxu0 0
  %199 = vmatpush1.bf16.xpose.msra.mxu0 0
  %200 = vmatprep.subr.bf16.mxu0 0
  %201 = vmatpush1.bf16.xpose.msra.mxu0 0
  %202 = vmatprep.subr.bf16.mxu0 0
  %203 = vmatpush1.bf16.xpose.msra.mxu0 0
  %204 = vmatprep.subr.bf16.mxu0 0
  %205 = vmatpush1.bf16.xpose.msra.mxu0 0
  %206 = vmatprep.subr.bf16.mxu0 0
  %207 = vmatpush1.bf16.xpose.msra.mxu0 0
  %208 = vmatprep.subr.bf16.mxu0 0
  %209 = vmatpush1.bf16.xpose.msra.mxu0 0
  %210 = vmatprep.subr.bf16.mxu0 0
  %211 = vmatpush1.bf16.xpose.msra.mxu0 0
  %212 = vmatprep.subr.bf16.mxu0 0
  %213 = vmatpush1.bf16.xpose.msra.mxu0 0
  %214 = vmatprep.subr.bf16.mxu0 0
  %215 = vmatpush1.bf16.xpose.msra.mxu0 0
  %216 = vmatprep.mubr.bf16.mxu0 %v37
  %217 = vmatmul.mubr.bf16.gmra.mrb[0].mxu0 %v36
  %v218 = vpop.f32.mrb[0].mxu0
  %v219 = vadd.f32 %v178, %v218
  %v220 = vpop.f32.mrb[0].mxu0
  %v221 = vpop.f32.mrb[0].mxu0
  %v222 = vadd.f32 %v181, %v221
  %v223 = vpop.f32.mrb[0].mxu0
  %224 = vdwg.mxu0
  %225 = vmatprep.subr.bf16.mxu0 %v116
  %226 = vmatpush1.bf16.xpose.msra.mxu0 %v115
  %227 = vmatprep.subr.bf16.mxu0 %v124
  %228 = vmatpush1.bf16.xpose.msra.mxu0 %v123
  %229 = vmatprep.subr.bf16.mxu0 0
  %230 = vmatpush1.bf16.xpose.msra.mxu0 0
  %231 = vmatprep.subr.bf16.mxu0 0
  %232 = vmatpush1.bf16.xpose.msra.mxu0 0
  %233 = vmatprep.subr.bf16.mxu0 0
  %234 = vmatpush1.bf16.xpose.msra.mxu0 0
  %235 = vmatprep.subr.bf16.mxu0 0
  %236 = vmatpush1.bf16.xpose.msra.mxu0 0
  %237 = vmatprep.subr.bf16.mxu0 0
  %238 = vmatpush1.bf16.xpose.msra.mxu0 0
  %239 = vmatprep.subr.bf16.mxu0 0
  %240 = vmatpush1.bf16.xpose.msra.mxu0 0
  %241 = vmatprep.subr.bf16.mxu0 0
  %242 = vmatpush1.bf16.xpose.msra.mxu0 0
  %243 = vmatprep.subr.bf16.mxu0 0
  %244 = vmatpush1.bf16.xpose.msra.mxu0 0
  %245 = vmatprep.subr.bf16.mxu0 0
  %246 = vmatpush1.bf16.xpose.msra.mxu0 0
  %247 = vmatprep.subr.bf16.mxu0 0
  %248 = vmatpush1.bf16.xpose.msra.mxu0 0
  %249 = vmatprep.subr.bf16.mxu0 0
  %250 = vmatpush1.bf16.xpose.msra.mxu0 0
  %251 = vmatprep.subr.bf16.mxu0 0
  %252 = vmatpush1.bf16.xpose.msra.mxu0 0
  %253 = vmatprep.subr.bf16.mxu0 0
  %254 = vmatpush1.bf16.xpose.msra.mxu0 0
  %255 = vmatprep.subr.bf16.mxu0 0
  %256 = vmatpush1.bf16.xpose.msra.mxu0 0
  %257 = vmatprep.mubr.bf16.mxu0 %v39
  %258 = vmatmul.mubr.bf16.gmra.mrb[0].mxu0 %v38
  %v259 = vpop.f32.mrb[0].mxu0
  %v260 = vadd.f32 %v219, %v259
  %v261 = vpop.f32.mrb[0].mxu0
  %v262 = vpop.f32.mrb[0].mxu0
  %v263 = vadd.f32 %v222, %v262
  %v264 = vpop.f32.mrb[0].mxu0
  %265 = vdwg.mxu0
  %266 = vmatprep.subr.bf16.mxu0 %v118
  %267 = vmatpush1.bf16.xpose.msra.mxu0 %v117
  %268 = vmatprep.subr.bf16.mxu0 %v126
  %269 = vmatpush1.bf16.xpose.msra.mxu0 %v125
  %270 = vmatprep.subr.bf16.mxu0 0
  %271 = vmatpush1.bf16.xpose.msra.mxu0 0
  %272 = vmatprep.subr.bf16.mxu0 0
  %273 = vmatpush1.bf16.xpose.msra.mxu0 0
  %274 = vmatprep.subr.bf16.mxu0 0
  %275 = vmatpush1.bf16.xpose.msra.mxu0 0
  %276 = vmatprep.subr.bf16.mxu0 0
  %277 = vmatpush1.bf16.xpose.msra.mxu0 0
  %278 = vmatprep.subr.bf16.mxu0 0
  %279 = vmatpush1.bf16.xpose.msra.mxu0 0
  %280 = vmatprep.subr.bf16.mxu0 0
  %281 = vmatpush1.bf16.xpose.msra.mxu0 0
  %282 = vmatprep.subr.bf16.mxu0 0
  %283 = vmatpush1.bf16.xpose.msra.mxu0 0
  %284 = vmatprep.subr.bf16.mxu0 0
  %285 = vmatpush1.bf16.xpose.msra.mxu0 0
  %286 = vmatprep.subr.bf16.mxu0 0
  %287 = vmatpush1.bf16.xpose.msra.mxu0 0
  %288 = vmatprep.subr.bf16.mxu0 0
  %289 = vmatpush1.bf16.xpose.msra.mxu0 0
  %290 = vmatprep.subr.bf16.mxu0 0
  %291 = vmatpush1.bf16.xpose.msra.mxu0 0
  %292 = vmatprep.subr.bf16.mxu0 0
  %293 = vmatpush1.bf16.xpose.msra.mxu0 0
  %294 = vmatprep.subr.bf16.mxu0 0
  %295 = vmatpush1.bf16.xpose.msra.mxu0 0
  %296 = vmatprep.subr.bf16.mxu0 0
  %297 = vmatpush1.bf16.xpose.msra.mxu0 0
  %298 = vmatprep.mubr.bf16.mxu0 %v41
  %299 = vmatmul.mubr.bf16.gmra.mrb[0].mxu0 %v40
  %v300 = vpop.f32.mrb[0].mxu0
  %v301 = vadd.f32 %v260, %v300
  %v302 = vpop.f32.mrb[0].mxu0
  %v303 = vpop.f32.mrb[0].mxu0
  %v304 = vadd.f32 %v263, %v303
  %v305 = vpop.f32.mrb[0].mxu0
  %306 = vdwg.mxu0
  %v307 = vmax.f32 %v301, 0.0
  %v308 = vmax.f32 %v304, 0.0
  %v309 = vpack.c.bf16 %v308, %v307
  %v310 = vld [vmem:[%s3] sm:$0xf]
  %v311 = vld [vmem:[%s3 + $0x4] sm:$0xf]
  %v312 = vld [vmem:[%s3 + $0x8] sm:$0xf]
  %v313 = vld [vmem:[%s3 + $0xc] sm:$0xf]
  %v314 = vld [vmem:[%s2 + $0x1] sm:$0x1]
  %v315 = vlaneseq
  %v316 = vshrl.u32 %v315, 7
  %v317 = vsub.s32 0, %v316
  %v318 = vrot.slane %v314, %v317
  %v323 = vunpack.c.l.b16 %v310
  %v324 = vunpack.c.l.b16 %v311
  %v325 = vunpack.c.l.b16 %v312
  %v326 = vunpack.c.l.b16 %v313
  %v327 = vpack.c.b16 %v324, %v323
  %v328 = vpack.c.b16 %v326, %v325
  %vm331 = vcmask 261120
  %v333 = vsel %vm331, %v309, 0
  %335 = vmatprep.subr.bf16.mxu0 0
  %336 = vmatpush1.bf16.msra.mxu0 %v327
  %337 = vmatprep.subr.bf16.mxu0 0
  %338 = vmatpush1.bf16.msra.mxu0 %v328
  %339 = vmatprep.subr.bf16.mxu0 0
  %340 = vmatpush1.bf16.msra.mxu0 0
  %341 = vmatprep.subr.bf16.mxu0 0
  %342 = vmatpush1.bf16.msra.mxu0 0
  %343 = vmatprep.subr.bf16.mxu0 0
  %344 = vmatpush1.bf16.msra.mxu0 0
  %345 = vmatprep.subr.bf16.mxu0 0
  %346 = vmatpush1.bf16.msra.mxu0 0
  %347 = vmatprep.subr.bf16.mxu0 0
  %348 = vmatpush1.bf16.msra.mxu0 0
  %349 = vmatprep.subr.bf16.mxu0 0
  %350 = vmatpush1.bf16.msra.mxu0 0
  %351 = vmatprep.subr.bf16.mxu0 0
  %352 = vmatpush1.bf16.msra.mxu0 0
  %353 = vmatprep.subr.bf16.mxu0 0
  %354 = vmatpush1.bf16.msra.mxu0 0
  %355 = vmatprep.subr.bf16.mxu0 0
  %356 = vmatpush1.bf16.msra.mxu0 0
  %357 = vmatprep.subr.bf16.mxu0 0
  %358 = vmatpush1.bf16.msra.mxu0 0
  %359 = vmatprep.subr.bf16.mxu0 0
  %360 = vmatpush1.bf16.msra.mxu0 0
  %361 = vmatprep.subr.bf16.mxu0 0
  %362 = vmatpush1.bf16.msra.mxu0 0
  %363 = vmatprep.subr.bf16.mxu0 0
  %364 = vmatpush1.bf16.msra.mxu0 0
  %365 = vmatprep.subr.bf16.mxu0 0
  %366 = vmatpush1.bf16.msra.mxu0 0
  %367 = vmatprep.mubr.bf16.mxu0 0
  %368 = vmatmul.mubr.bf16.gmra.mrb[0].mxu0 %v333
  %v369 = vpop.f32.mrb[0].mxu0
  %v370 = vadd.f32 %v318, %v369
  %v371 = vpop.f32.mrb[0].mxu0
  %v372 = vpop.f32.mrb[0].mxu0
  %v373 = vadd.f32 %v318, %v372
  %v374 = vpop.f32.mrb[0].mxu0
  %375 = vdwg.mxu0
  %v376 = vpack.c.bf16 %v373, %v370
  %v378 = vunpack.c.l.b16 %v376
  %v379 = vunpack.c.h.b16 %v376
  %v380 = vpack.c.b16 %v378, %v378
  %v381 = vpack.c.b16 %v379, %v379
  %384 = vst [vmem:[%s4] sm:$0xf] %v380
  %385 = vst [vmem:[%s4 + $0x4] sm:$0xf] %v381
  // Predicated region
  $region18: #{base_head_split.1} parent=0 // pred_check
    _
  $region19: #{base_head_split.1} parent=0 // pred_check_branch
    %387 = sbr.rel (0) target = $region21
  $region20: #{base_head_split.1} parent=0 // pred_region
    _
  $region21: #{base_head_split.1} parent=0 // pred_fallthru
    _
  // Predicated region
  $region22: #{base_head_split.1} parent=0 // pred_check
    _
  $region23: #{base_head_split.1} parent=0 // pred_check_branch
    %389 = sbr.rel (0) target = $region25
  $region24: #{base_head_split.1} parent=0 // pred_region
    _
  $region25: #{base_head_split.1} parent=0 // pred_fallthru
    _

</llo_original>
